<compile_context>
chip_gen: v5e
topology: v5e:2x2
jax: 0.10.0
libtpu: 0.0.40
codegen_flags: <defaults>
</compile_context>

<pallas_src>
import jax
import jax.numpy as jnp
from jax.experimental import pallas as pl
from jax.experimental.pallas import tpu as pltpu

ALPHA = 0.2   # LeakyReLU negative slope (module default)
LANE = 128


def _leaky_relu(x, alpha=ALPHA):
    return jnp.where(x > 0, x, alpha * x)


def _round_up(n, m):
    return ((n + m - 1) // m) * m


def _vmem_capacity_bytes():
    """Physical VMEM per TensorCore; conservative fallback if the query is unavailable."""
    try:
        info = pltpu.get_tpu_info()
        cap = getattr(info, "vmem_capacity_bytes", None)
        if cap:
            return int(cap)
    except Exception:
        pass
    return 64 * 1024 * 1024   # v7x per-TC size (smallest of v5e/v6e/v7x)


def mlp_kernel(x_ref, w1_ref, b1_ref, w2_ref, b2_ref, w3_ref, b3_ref, o_ref):
    # Linear -> LeakyReLU   (dropout is identity in inference mode)
    x = x_ref[...]
    h1 = jnp.dot(x.astype(w1_ref.dtype), w1_ref[...],
                 preferred_element_type=jnp.float32) + b1_ref[...]
    h1 = _leaky_relu(h1)

    # Linear_2 -> LeakyReLU (dropout is identity in inference mode)
    h2 = jnp.dot(h1.astype(w2_ref.dtype), w2_ref[...],
                 preferred_element_type=jnp.float32) + b2_ref[...]
    h2 = _leaky_relu(h2)

    # Linear_3
    logits = jnp.dot(h2.astype(w3_ref.dtype), w3_ref[...],
                     preferred_element_type=jnp.float32) + b3_ref[...]

    # log_softmax over the class (lane) dimension, f32, numerically stable.
    # exp/log go to the EUP slot and max/sum to the XLU slot -> overlap the MXU pushes.
    m = jnp.max(logits, axis=-1, keepdims=True)
    shifted = logits - m
    lse = jnp.log(jnp.sum(jnp.exp(shifted), axis=-1, keepdims=True))
    o_ref[...] = (shifted - lse).astype(o_ref.dtype)


def prepare_params(params, *, weight_dtype=jnp.bfloat16):
    """One-time weight preparation (hoisted out of the forward pass).

    Pads the hidden dims to lane multiples (exact: LeakyReLU(0)=0 and the matching weight
    rows are zero) and stores the weight matrices in bf16 for the MXU. Biases stay f32.
    Weights are expected pre-transposed: w (in, out), b (out,) or (1, out).
    """
    w1, b1, w2, b2, w3, b3 = params
    nfeat, outfeat = w1.shape
    outd_1 = w2.shape[1]
    nclass = w3.shape[1]
    H1p = _round_up(outfeat, LANE)
    H2p = _round_up(outd_1, LANE)
    f32 = jnp.float32

    w1p = jnp.zeros((nfeat, H1p), weight_dtype).at[:, :outfeat].set(w1.astype(weight_dtype))
    b1p = jnp.zeros((1, H1p), f32).at[:, :outfeat].set(b1.reshape(1, -1).astype(f32))
    w2p = jnp.zeros((H1p, H2p), weight_dtype).at[:outfeat, :outd_1].set(w2.astype(weight_dtype))
    b2p = jnp.zeros((1, H2p), f32).at[:, :outd_1].set(b2.reshape(1, -1).astype(f32))
    w3p = jnp.zeros((H2p, nclass), weight_dtype).at[:outd_1, :].set(w3.astype(weight_dtype))
    b3p = b3.reshape(1, -1).astype(f32)
    return (w1p, b1p, w2p, b2p, w3p, b3p)


def mlp_forward(x, prepared, *, tm=512):
    """Fused MLP forward. x: (N, nfeat) float. Returns (N, nclass) f32 log-probs."""
    w1p, b1p, w2p, b2p, w3p, b3p = prepared
    N, nfeat = x.shape
    assert nfeat == w1p.shape[0], "x feature dim does not match prepared W1"
    H1p = w1p.shape[1]
    H2p = w2p.shape[1]
    nclass = w3p.shape[1]

    x_bytes = x.dtype.itemsize
    w_bytes = sum(int(a.size) * a.dtype.itemsize for a in prepared)
    Fp = _round_up(nfeat, LANE)    # physical lane-padded widths once resident in VMEM
    Cp = _round_up(nclass, LANE)

    def footprint(t):
        # Streamed x / out tiles (default double-buffered pipeline).
        stream = 2 * t * Fp * x_bytes + 2 * t * Cp * 4
        # Resident weights/biases; constant index_maps still get the default double buffer.
        # TODO(synk): pipeline_mode=pl.Buffered(1) on the constant weight specs would halve
        # this (matters most on v7x's 64 MiB VMEM); left off for lowering robustness.
        weights = 2 * w_bytes
        # In-kernel intermediates: h1/h2/logits + exp/shift temps + bf16 operand copies.
        inter = t * (H1p + H2p + 3 * Cp) * 4 + t * (Fp + H1p + H2p) * 2
        return stream + weights + inter

    budget = int(_vmem_capacity_bytes() * 0.75)   # ~48 MiB on v7x, ~96 MiB on v5e/v6e

    # Row tile: single step for tiny N; for large N, 256-aligned tiles with >= 8 grid steps.
    if N <= tm:
        tm_eff = N                                          # full-dim row block (always legal)
    else:
        tm_eff = min(_round_up(-(-N // 8), 256), _round_up(tm, 256))
        if tm_eff >= N:
            tm_eff = N
    # Shrink until the intermediate-inclusive footprint fits the generation's VMEM budget.
    while footprint(tm_eff) > budget and tm_eff > 8:
        nxt = _round_up(max(tm_eff // 2, 8), 8)
        if nxt >= tm_eff:
            break
        tm_eff = nxt

    vmem_limit = int(min(max(int(footprint(tm_eff) * 1.25), 32 * 1024 * 1024), budget))

    grid = (pl.cdiv(N, tm_eff),)
    const = lambda shape: pl.BlockSpec(shape, lambda i: (0, 0))

    out = pl.pallas_call(
        mlp_kernel,
        out_shape=jax.ShapeDtypeStruct((N, nclass), jnp.float32),
        grid=grid,
        in_specs=[
            pl.BlockSpec((tm_eff, nfeat), lambda i: (i, 0)),  # streamed x rows (no padding pass)
            const((nfeat, H1p)),   # W1^T (resident, bf16)
            const((1, H1p)),       # b1   (f32)
            const((H1p, H2p)),     # W2^T
            const((1, H2p)),       # b2
            const((H2p, nclass)),  # W3^T (class dim unpadded)
            const((1, nclass)),    # b3
        ],
        out_specs=pl.BlockSpec((tm_eff, nclass), lambda i: (i, 0)),
        compiler_params=pltpu.CompilerParams(
            dimension_semantics=("parallel",),
            vmem_limit_bytes=vmem_limit,
        ),
    )(x, w1p, b1p, w2p, b2p, w3p, b3p)
    return out


def init_params(key, nfeat, outfeat, outd_1, nclass):
    """Deterministic synthetic params, matching nn.Linear init (stored pre-transposed)."""
    ks = jax.random.split(key, 6)

    def lin(kw, kb, fan_in, fan_out):
        bound = 1.0 / jnp.sqrt(fan_in)
        w = jax.random.uniform(kw, (fan_in, fan_out), jnp.float32, -bound, bound)
        b = jax.random.uniform(kb, (1, fan_out), jnp.float32, -bound, bound)
        return w, b

    w1, b1 = lin(ks[0], ks[1], nfeat, outfeat)
    w2, b2 = lin(ks[2], ks[3], outfeat, outd_1)
    w3, b3 = lin(ks[4], ks[5], outd_1, nclass)
    return (w1, b1, w2, b2, w3, b3)


def mlp_reference(x, params, *, weight_dtype=jnp.bfloat16):
    """Pure-JAX reference mirroring the kernel's dtype flow (inference: dropout = identity)."""
    w1, b1, w2, b2, w3, b3 = params

    def mm(a, w):
        return jnp.dot(a.astype(weight_dtype), w.astype(weight_dtype),
                       preferred_element_type=jnp.float32)

    h = _leaky_relu(mm(x, w1) + b1)
    h = _leaky_relu(mm(h, w2) + b2)
    logits = mm(h, w3) + b3
    return jax.nn.log_softmax(logits, axis=1)


if __name__ == "__main__":
    nfeat, outfeat, outd_1, nclass = 32, 32, 16, 8
    N = 16  # number of samples / graph nodes

    key = jax.random.PRNGKey(0)
    kx, kp = jax.random.split(key)
    x = jax.random.normal(kx, (N, nfeat), jnp.float32)
    params = init_params(kp, nfeat, outfeat, outd_1, nclass)

    prepared = prepare_params(params)   # one-time padding / bf16 cast (hoisted out of forward)

    out = mlp_forward(x, prepared)
    out = jax.block_until_ready(out)

    ref = mlp_reference(x, params)
    assert out.shape == (N, nclass)
    assert bool(jnp.allclose(out, ref, atol=1e-3, rtol=1e-3)), "mismatch vs reference"

    print("KERNEL_OK")
</pallas_src>

<mosaic_0001>
module attributes {stable_mosaic.version = 11 : i64} {
  func.func @mlp_kernel(%arg0: i32, %arg1: memref<16x32xf32, #tpu.memory_space<vmem>>, %arg2: memref<32x128xbf16, #tpu.memory_space<vmem>>, %arg3: memref<1x128xf32, #tpu.memory_space<vmem>>, %arg4: memref<128x128xbf16, #tpu.memory_space<vmem>>, %arg5: memref<1x128xf32, #tpu.memory_space<vmem>>, %arg6: memref<128x8xbf16, #tpu.memory_space<vmem>>, %arg7: memref<1x8xf32, #tpu.memory_space<vmem>>, %arg8: memref<16x8xf32, #tpu.memory_space<vmem>>) attributes {dimension_semantics = [#tpu.dimension_semantics<parallel>], iteration_bounds = array<i64: 1>, scalar_prefetch = 0 : i64, scratch_operands = 0 : i64, tpu.core_type = #tpu.core_type<tc>, window_params = [{transform_indices = @transform_0, window_bounds = array<i64: 16, 32>}, {pipeline_mode = #tpu.pipeline_mode<synchronous>, transform_indices = @transform_1, window_bounds = array<i64: 32, 128>}, {pipeline_mode = #tpu.pipeline_mode<synchronous>, transform_indices = @transform_2, window_bounds = array<i64: 1, 128>}, {pipeline_mode = #tpu.pipeline_mode<synchronous>, transform_indices = @transform_3, window_bounds = array<i64: 128, 128>}, {pipeline_mode = #tpu.pipeline_mode<synchronous>, transform_indices = @transform_4, window_bounds = array<i64: 1, 128>}, {pipeline_mode = #tpu.pipeline_mode<synchronous>, transform_indices = @transform_5, window_bounds = array<i64: 128, 8>}, {pipeline_mode = #tpu.pipeline_mode<synchronous>, transform_indices = @transform_6, window_bounds = array<i64: 1, 8>}, {transform_indices = @transform_7, window_bounds = array<i64: 16, 8>}]} {
    %c0 = arith.constant 0 : index
    %c0_0 = arith.constant 0 : index
    %0 = vector.load %arg1[%c0, %c0_0] : memref<16x32xf32, #tpu.memory_space<vmem>>, vector<16x32xf32>
    %1 = arith.truncf %0 : vector<16x32xf32> to vector<16x32xbf16>
    %c0_1 = arith.constant 0 : index
    %c0_2 = arith.constant 0 : index
    %2 = vector.load %arg2[%c0_1, %c0_2] : memref<32x128xbf16, #tpu.memory_space<vmem>>, vector<32x128xbf16>
    %cst = arith.constant dense<0.000000e+00> : vector<16x128xf32>
    %3 = tpu.matmul %1, %2, %cst {dimension_numbers = #tpu.dot_dimension_numbers<[1], [0], [0], [1], [0, 0, 1, 1], [], []>} : vector<16x32xbf16>, vector<32x128xbf16>, vector<16x128xf32> -> vector<16x128xf32>
    %c0_3 = arith.constant 0 : index
    %c0_4 = arith.constant 0 : index
    %4 = vector.load %arg3[%c0_3, %c0_4] : memref<1x128xf32, #tpu.memory_space<vmem>>, vector<1x128xf32>
    %5 = vector.broadcast %4 : vector<1x128xf32> to vector<16x128xf32>
    %6 = arith.addf %3, %5 : vector<16x128xf32>
    %cst_5 = arith.constant 0.000000e+00 : f32
    %7 = vector.broadcast %cst_5 : f32 to vector<16x128xf32>
    %8 = arith.cmpf ogt, %6, %7 : vector<16x128xf32>
    %cst_6 = arith.constant 2.000000e-01 : f32
    %9 = vector.broadcast %cst_6 : f32 to vector<16x128xf32>
    %10 = arith.mulf %9, %6 : vector<16x128xf32>
    %11 = arith.select %8, %6, %10 : vector<16x128xi1>, vector<16x128xf32>
    %12 = arith.truncf %11 : vector<16x128xf32> to vector<16x128xbf16>
    %c0_7 = arith.constant 0 : index
    %c0_8 = arith.constant 0 : index
    %13 = vector.load %arg4[%c0_7, %c0_8] : memref<128x128xbf16, #tpu.memory_space<vmem>>, vector<128x128xbf16>
    %cst_9 = arith.constant dense<0.000000e+00> : vector<16x128xf32>
    %14 = tpu.matmul %12, %13, %cst_9 {dimension_numbers = #tpu.dot_dimension_numbers<[1], [0], [0], [1], [0, 0, 1, 1], [], []>} : vector<16x128xbf16>, vector<128x128xbf16>, vector<16x128xf32> -> vector<16x128xf32>
    %c0_10 = arith.constant 0 : index
    %c0_11 = arith.constant 0 : index
    %15 = vector.load %arg5[%c0_10, %c0_11] : memref<1x128xf32, #tpu.memory_space<vmem>>, vector<1x128xf32>
    %16 = vector.broadcast %15 : vector<1x128xf32> to vector<16x128xf32>
    %17 = arith.addf %14, %16 : vector<16x128xf32>
    %cst_12 = arith.constant 0.000000e+00 : f32
    %18 = vector.broadcast %cst_12 : f32 to vector<16x128xf32>
    %19 = arith.cmpf ogt, %17, %18 : vector<16x128xf32>
    %cst_13 = arith.constant 2.000000e-01 : f32
    %20 = vector.broadcast %cst_13 : f32 to vector<16x128xf32>
    %21 = arith.mulf %20, %17 : vector<16x128xf32>
    %22 = arith.select %19, %17, %21 : vector<16x128xi1>, vector<16x128xf32>
    %23 = arith.truncf %22 : vector<16x128xf32> to vector<16x128xbf16>
    %c0_14 = arith.constant 0 : index
    %c0_15 = arith.constant 0 : index
    %24 = vector.load %arg6[%c0_14, %c0_15] : memref<128x8xbf16, #tpu.memory_space<vmem>>, vector<128x8xbf16>
    %cst_16 = arith.constant dense<0.000000e+00> : vector<16x8xf32>
    %25 = tpu.matmul %23, %24, %cst_16 {dimension_numbers = #tpu.dot_dimension_numbers<[1], [0], [0], [1], [0, 0, 1, 1], [], []>} : vector<16x128xbf16>, vector<128x8xbf16>, vector<16x8xf32> -> vector<16x8xf32>
    %c0_17 = arith.constant 0 : index
    %c0_18 = arith.constant 0 : index
    %26 = vector.load %arg7[%c0_17, %c0_18] : memref<1x8xf32, #tpu.memory_space<vmem>>, vector<1x8xf32>
    %27 = vector.broadcast %26 : vector<1x8xf32> to vector<16x8xf32>
    %28 = arith.addf %25, %27 : vector<16x8xf32>
    %cst_19 = arith.constant dense<0xFF800000> : vector<16xf32>
    %29 = vector.multi_reduction <maximumf>, %28, %cst_19 [1] : vector<16x8xf32> to vector<16xf32>
    %30 = vector.shape_cast %29 : vector<16xf32> to vector<16x1xf32>
    %31 = vector.broadcast %30 : vector<16x1xf32> to vector<16x8xf32>
    %32 = arith.subf %28, %31 : vector<16x8xf32>
    %33 = math.exp %32 : vector<16x8xf32>
    %cst_20 = arith.constant dense<0.000000e+00> : vector<16xf32>
    %34 = vector.multi_reduction <add>, %33, %cst_20 [1] : vector<16x8xf32> to vector<16xf32>
    %35 = vector.shape_cast %34 : vector<16xf32> to vector<16x1xf32>
    %36 = math.log %35 : vector<16x1xf32>
    %37 = vector.broadcast %36 : vector<16x1xf32> to vector<16x8xf32>
    %38 = arith.subf %32, %37 : vector<16x8xf32>
    %c0_21 = arith.constant 0 : index
    %c0_22 = arith.constant 0 : index
    %39 = vector.load %arg8[%c0_21, %c0_22] : memref<16x8xf32, #tpu.memory_space<vmem>>, vector<16x8xf32>
    tpu.vector_store %arg8[%c0_21, %c0_22], %38 {strides = array<i32>} : memref<16x8xf32, #tpu.memory_space<vmem>>, vector<16x8xf32>,
    return
  }
  func.func @transform_0(%arg0: i32) -> (i32, i32) {
    %c0_i32 = arith.constant 0 : i32
    %c0_i32_0 = arith.constant 0 : i32
    return %arg0, %c0_i32 : i32, i32
  }
  func.func @transform_1(%arg0: i32) -> (i32, i32) {
    %c0_i32 = arith.constant 0 : i32
    %c0_i32_0 = arith.constant 0 : i32
    %c0_i32_1 = arith.constant 0 : i32
    return %c0_i32, %c0_i32_0 : i32, i32
  }
  func.func @transform_2(%arg0: i32) -> (i32, i32) {
    %c0_i32 = arith.constant 0 : i32
    %c0_i32_0 = arith.constant 0 : i32
    %c0_i32_1 = arith.constant 0 : i32
    return %c0_i32, %c0_i32_0 : i32, i32
  }
  func.func @transform_3(%arg0: i32) -> (i32, i32) {
    %c0_i32 = arith.constant 0 : i32
    %c0_i32_0 = arith.constant 0 : i32
    %c0_i32_1 = arith.constant 0 : i32
    return %c0_i32, %c0_i32_0 : i32, i32
  }
  func.func @transform_4(%arg0: i32) -> (i32, i32) {
    %c0_i32 = arith.constant 0 : i32
    %c0_i32_0 = arith.constant 0 : i32
    %c0_i32_1 = arith.constant 0 : i32
    return %c0_i32, %c0_i32_0 : i32, i32
  }
  func.func @transform_5(%arg0: i32) -> (i32, i32) {
    %c0_i32 = arith.constant 0 : i32
    %c0_i32_0 = arith.constant 0 : i32
    %c0_i32_1 = arith.constant 0 : i32
    return %c0_i32, %c0_i32_0 : i32, i32
  }
  func.func @transform_6(%arg0: i32) -> (i32, i32) {
    %c0_i32 = arith.constant 0 : i32
    %c0_i32_0 = arith.constant 0 : i32
    %c0_i32_1 = arith.constant 0 : i32
    return %c0_i32, %c0_i32_0 : i32, i32
  }
  func.func @transform_7(%arg0: i32) -> (i32, i32) {
    %c0_i32 = arith.constant 0 : i32
    %c0_i32_0 = arith.constant 0 : i32
    return %arg0, %c0_i32 : i32, i32
  }
}

</mosaic_0001>

<llo_original>
// kernel: tpu_custom_call.1
$region0: #{tpu_custom_call.1}
  #allocation0 [shape = 'u32[]', space=smem, size = 0x4, offset = 0x4, fixed_abs, tag = 'smem constant byte address 0x4 - core index']
  #allocation1 [shape = 'u32[72,128]{1,0:T(1,128)}', space=vmem, size = 0x9000, scoped, tag = 'internal scratch']
  %s0 = inlined_call_operand.hbm [shape: f32[16,32], index: 0, kind: input, shape index: {}]
  %s1 = inlined_call_operand.hbm [shape: bf16[32,128], index: 1, kind: input, shape index: {}]
  %s2 = inlined_call_operand.vmem [shape: f32[1,128], index: 2, kind: input, shape index: {}]
  %s3 = inlined_call_operand.vmem [shape: bf16[128,128], index: 3, kind: input, shape index: {}]
  %s4 = inlined_call_operand.vmem [shape: f32[1,128], index: 4, kind: input, shape index: {}]
  %s5 = inlined_call_operand.vmem [shape: bf16[128,8], index: 5, kind: input, shape index: {}]
  %s6 = inlined_call_operand.vmem [shape: f32[1,8], index: 6, kind: input, shape index: {}]
  %s7 = inlined_call_operand.vmem [shape: f32[16,8], index: 7, kind: output, shape index: {}]
  %s8 = sld [smem:[#allocation0]]
  $region46: #{tpu_custom_call.1} parent=0
    _
  %s10 = ssub.s32 1, %s8
  %s11 = scalar_select 0, %s10, %s8
  $region1: #{tpu_custom_call.1} parent=0
    #allocation2 [shape = 'u8[8192]{0}', space=vmem, size = 0x2000, scoped, tag = 'input window, operand 0, single buffered']
    #allocation3 [shape = 's32[1]{0}', space=sflag, size = 0x4, scoped, tag = 'scoped memory for tpu_custom_call.1']
    #allocation4 [shape = 'u8[8192]{0}', space=vmem, size = 0x2000, scoped, tag = 'input window, operand 1, single buffered']
    #allocation5 [shape = 's32[1]{0}', space=sflag, size = 0x4, scoped, tag = 'scoped memory for tpu_custom_call.1']
    %12 = vsyncpa [#allocation3], 0
    %13 = vsyncpa [#allocation5], 0
    // Predicated region
    $region2: #{tpu_custom_call.1} parent=1 // pred_check
      _
    $region3: #{tpu_custom_call.1} parent=1 // pred_check_branch
      %15 = sbr.rel (0) target = $region5
    $region4: #{tpu_custom_call.1} parent=1 // pred_region
      %17 = vsyncadd [#allocation3], 0
      %s18 = sshll.u32 %s0, 4
      %s19 = int_to_ptr.hbm [resolvable:$true] %s18
      %s20 = sshll.u32 [#allocation2], 4
      %s21 = int_to_ptr.vmem [resolvable:$true] %s20
      %26 = dma.hbm_to_vmem [thread:$0]  %s19, 256, %s21, [#allocation3], 128, 128, 8
    $region5: #{tpu_custom_call.1} parent=1 // pred_fallthru
      _
    // Predicated region
    $region6: #{tpu_custom_call.1} parent=1 // pred_check
      _
    $region7: #{tpu_custom_call.1} parent=1 // pred_check_branch
      %28 = sbr.rel (0) target = $region9
    $region8: #{tpu_custom_call.1} parent=1 // pred_region
      %30 = vsyncadd [#allocation5], 0
      %s31 = sshll.u32 %s1, 4
      %s32 = int_to_ptr.hbm [resolvable:$true] %s31
      %s33 = sshll.u32 [#allocation4], 4
      %s34 = int_to_ptr.vmem [resolvable:$true] %s33
      %39 = dma.hbm_to_vmem [thread:$0]  %s32, 256, %s34, [#allocation5], 64, 64, 4
    $region9: #{tpu_custom_call.1} parent=1 // pred_fallthru
      _
    // Predicated region
    $region10: #{tpu_custom_call.1} parent=1 // pred_check
      _
    $region11: #{tpu_custom_call.1} parent=1 // pred_check_branch
      %41 = sbr.rel (0) target = $region13
    $region12: #{tpu_custom_call.1} parent=1 // pred_region
      _
    $region13: #{tpu_custom_call.1} parent=1 // pred_fallthru
      _
    // Predicated region
    $region14: #{tpu_custom_call.1} parent=1 // pred_check
      _
    $region15: #{tpu_custom_call.1} parent=1 // pred_check_branch
      %43 = sbr.rel (0) target = $region17
    $region16: #{tpu_custom_call.1} parent=1 // pred_region
      _
    $region17: #{tpu_custom_call.1} parent=1 // pred_fallthru
      _
    // Predicated region
    $region18: #{tpu_custom_call.1} parent=1 // pred_check
      _
    $region19: #{tpu_custom_call.1} parent=1 // pred_check_branch
      %45 = sbr.rel (0) target = $region21
    $region20: #{tpu_custom_call.1} parent=1 // pred_region
      _
    $region21: #{tpu_custom_call.1} parent=1 // pred_fallthru
      _
    // Predicated region
    $region22: #{tpu_custom_call.1} parent=1 // pred_check
      _
    $region23: #{tpu_custom_call.1} parent=1 // pred_check_branch
      %47 = sbr.rel (0) target = $region25
    $region24: #{tpu_custom_call.1} parent=1 // pred_region
      _
    $region25: #{tpu_custom_call.1} parent=1 // pred_fallthru
      _
    // Predicated region
    $region26: #{tpu_custom_call.1} parent=1 // pred_check
      _
    $region27: #{tpu_custom_call.1} parent=1 // pred_check_branch
      %49 = sbr.rel (0) target = $region29
    $region28: #{tpu_custom_call.1} parent=1 // pred_region
      _
    $region29: #{tpu_custom_call.1} parent=1 // pred_fallthru
      _
    // Predicated region
    $region30: #{tpu_custom_call.1} parent=1 // pred_check
      _
    $region31: #{tpu_custom_call.1} parent=1 // pred_check_branch
      %51 = sbr.rel (0) target = $region33
    $region32: #{tpu_custom_call.1} parent=1 // pred_region
      %53 = dma.done [#allocation3], 256
    $region33: #{tpu_custom_call.1} parent=1 // pred_fallthru
      _
    // Predicated region
    $region34: #{tpu_custom_call.1} parent=1 // pred_check
      _
    $region35: #{tpu_custom_call.1} parent=1 // pred_check_branch
      %55 = sbr.rel (0) target = $region37
    $region36: #{tpu_custom_call.1} parent=1 // pred_region
      %57 = dma.done [#allocation5], 256
    $region37: #{tpu_custom_call.1} parent=1 // pred_fallthru
      _
    %v59 = vld [vmem:[#allocation2] sm:$0xff]
    %v60 = vld [vmem:[#allocation2 + $0x8] sm:$0xff]
    %v61 = vpack.c.bf16 %v60, %v59
    %v62 = vld [vmem:[#allocation4] sm:$0xf]
    %v63 = vld [vmem:[#allocation4 + $0x4] sm:$0xf]
    %v64 = vld [vmem:[#allocation4 + $0x8] sm:$0xf]
    %v65 = vld [vmem:[#allocation4 + $0xc] sm:$0xf]
    %v66 = vld [vmem:[%s2] sm:$0x1]
    %v68 = vperm.slane %v66, 0
    %v74 = vunpack.c.l.b16 %v62
    %v75 = vunpack.c.l.b16 %v63
    %v76 = vunpack.c.l.b16 %v64
    %v77 = vunpack.c.l.b16 %v65
    %v78 = vpack.c.b16 %v75, %v74
    %v79 = vpack.c.b16 %v77, %v76
    %vm82 = vcmask 261120
    %v84 = vsel %vm82, %v61, 0
    %86 = vmatpush.bf16.msra.mxu0 0
    %87 = vmatpush.bf16.msra.mxu0 0
    %88 = vmatpush.bf16.msra.mxu0 0
    %89 = vmatpush.bf16.msra.mxu0 0
    %90 = vmatpush.bf16.msra.mxu0 0
    %91 = vmatpush.bf16.msra.mxu0 0
    %92 = vmatpush.bf16.msra.mxu0 %v79
    %93 = vmatpush.bf16.msra.mxu0 %v78
    %94 = vmatmul.bf16.gmra.mxu0 %v84
    %v95 = vpop.f32.mrf.mxu0
    %v96 = vadd.f32 %v68, %v95
    %v97 = vpop.f32.mrf.mxu0
    %v98 = vadd.f32 %v68, %v97
    %99 = vdwg.mxu0
    %vm100 = vcmp.gt.f32.partialorder %v96, 0.0
    %vm101 = vcmp.gt.f32.partialorder %v98, 0.0
    %v102 = vmul.f32 %v96, 0.2
    %v103 = vmul.f32 %v98, 0.2
    %v104 = vsel %vm100, %v96, %v102
    %v105 = vsel %vm101, %v98, %v103
    %v106 = vpack.c.bf16 %v105, %v104
    %v107 = vld [vmem:[%s3] sm:$0xf]
    %v108 = vld [vmem:[%s3 + $0x4] sm:$0xf]
    %v109 = vld [vmem:[%s3 + $0x8] sm:$0xf]
    %v110 = vld [vmem:[%s3 + $0xc] sm:$0xf]
    %v111 = vld [vmem:[%s3 + $0x10] sm:$0xf]
    %v112 = vld [vmem:[%s3 + $0x14] sm:$0xf]
    %v113 = vld [vmem:[%s3 + $0x18] sm:$0xf]
    %v114 = vld [vmem:[%s3 + $0x1c] sm:$0xf]
    %v115 = vld [vmem:[%s3 + $0x20] sm:$0xf]
    %v116 = vld [vmem:[%s3 + $0x24] sm:$0xf]
    %v117 = vld [vmem:[%s3 + $0x28] sm:$0xf]
    %v118 = vld [vmem:[%s3 + $0x2c] sm:$0xf]
    %v119 = vld [vmem:[%s3 + $0x30] sm:$0xf]
    %v120 = vld [vmem:[%s3 + $0x34] sm:$0xf]
    %v121 = vld [vmem:[%s3 + $0x38] sm:$0xf]
    %v122 = vld [vmem:[%s3 + $0x3c] sm:$0xf]
    %v123 = vld [vmem:[%s4] sm:$0x1]
    %v125 = vperm.slane %v123, 0
    %v143 = vunpack.c.l.b16 %v107
    %v144 = vunpack.c.l.b16 %v108
    %v145 = vunpack.c.l.b16 %v109
    %v146 = vunpack.c.l.b16 %v110
    %v147 = vunpack.c.l.b16 %v111
    %v148 = vunpack.c.l.b16 %v112
    %v149 = vunpack.c.l.b16 %v113
    %v150 = vunpack.c.l.b16 %v114
    %v151 = vunpack.c.l.b16 %v115
    %v152 = vunpack.c.l.b16 %v116
    %v153 = vunpack.c.l.b16 %v117
    %v154 = vunpack.c.l.b16 %v118
    %v155 = vunpack.c.l.b16 %v119
    %v156 = vunpack.c.l.b16 %v120
    %v157 = vunpack.c.l.b16 %v121
    %v158 = vunpack.c.l.b16 %v122
    %v159 = vpack.c.b16 %v144, %v143
    %v160 = vpack.c.b16 %v146, %v145
    %v161 = vpack.c.b16 %v148, %v147
    %v162 = vpack.c.b16 %v150, %v149
    %v163 = vpack.c.b16 %v152, %v151
    %v164 = vpack.c.b16 %v154, %v153
    %v165 = vpack.c.b16 %v156, %v155
    %v166 = vpack.c.b16 %v158, %v157
    %175 = vmatpush.bf16.msra.mxu0 %v166
    %176 = vmatpush.bf16.msra.mxu0 %v165
    %177 = vmatpush.bf16.msra.mxu0 %v164
    %178 = vmatpush.bf16.msra.mxu0 %v163
    %179 = vmatpush.bf16.msra.mxu0 %v162
    %180 = vmatpush.bf16.msra.mxu0 %v161
    %181 = vmatpush.bf16.msra.mxu0 %v160
    %182 = vmatpush.bf16.msra.mxu0 %v159
    %183 = vmatmul.bf16.gmra.mxu0 %v106
    %v184 = vpop.f32.mrf.mxu0
    %v185 = vadd.f32 %v125, %v184
    %v186 = vpop.f32.mrf.mxu0
    %v187 = vadd.f32 %v125, %v186
    %188 = vdwg.mxu0
    %vm189 = vcmp.gt.f32.partialorder %v185, 0.0
    %vm190 = vcmp.gt.f32.partialorder %v187, 0.0
    %v191 = vmul.f32 %v185, 0.2
    %v192 = vmul.f32 %v187, 0.2
    %v193 = vsel %vm189, %v185, %v191
    %v194 = vsel %vm190, %v187, %v192
    %v195 = vpack.c.bf16 %v194, %v193
    %v196 = vld [vmem:[%s5] sm:$0xf]
    %v197 = vld [vmem:[%s5 + $0x4] sm:$0xf]
    %v198 = vld [vmem:[%s5 + $0x8] sm:$0xf]
    %v199 = vld [vmem:[%s5 + $0xc] sm:$0xf]
    %v200 = vld [vmem:[%s5 + $0x10] sm:$0xf]
    %v201 = vld [vmem:[%s5 + $0x14] sm:$0xf]
    %v202 = vld [vmem:[%s5 + $0x18] sm:$0xf]
    %v203 = vld [vmem:[%s5 + $0x1c] sm:$0xf]
    %v204 = vld [vmem:[%s5 + $0x20] sm:$0xf]
    %v205 = vld [vmem:[%s5 + $0x24] sm:$0xf]
    %v206 = vld [vmem:[%s5 + $0x28] sm:$0xf]
    %v207 = vld [vmem:[%s5 + $0x2c] sm:$0xf]
    %v208 = vld [vmem:[%s5 + $0x30] sm:$0xf]
    %v209 = vld [vmem:[%s5 + $0x34] sm:$0xf]
    %v210 = vld [vmem:[%s5 + $0x38] sm:$0xf]
    %v211 = vld [vmem:[%s5 + $0x3c] sm:$0xf]
    %v212 = vld [vmem:[%s6] sm:$0x1]
    %v214 = vperm.slane %v212, 0
    %v232 = vunpack.c.l.b16 %v196
    %v233 = vunpack.c.l.b16 %v197
    %v234 = vunpack.c.l.b16 %v198
    %v235 = vunpack.c.l.b16 %v199
    %v236 = vunpack.c.l.b16 %v200
    %v237 = vunpack.c.l.b16 %v201
    %v238 = vunpack.c.l.b16 %v202
    %v239 = vunpack.c.l.b16 %v203
    %v240 = vunpack.c.l.b16 %v204
    %v241 = vunpack.c.l.b16 %v205
    %v242 = vunpack.c.l.b16 %v206
    %v243 = vunpack.c.l.b16 %v207
    %v244 = vunpack.c.l.b16 %v208
    %v245 = vunpack.c.l.b16 %v209
    %v246 = vunpack.c.l.b16 %v210
    %v247 = vunpack.c.l.b16 %v211
    %v248 = vpack.c.b16 %v233, %v232
    %v249 = vpack.c.b16 %v235, %v234
    %v250 = vpack.c.b16 %v237, %v236
    %v251 = vpack.c.b16 %v239, %v238
    %v252 = vpack.c.b16 %v241, %v240
    %v253 = vpack.c.b16 %v243, %v242
    %v254 = vpack.c.b16 %v245, %v244
    %v255 = vpack.c.b16 %v247, %v246
    %264 = vmatpush.bf16.msra.mxu0 %v255
    %265 = vmatpush.bf16.msra.mxu0 %v254
    %266 = vmatpush.bf16.msra.mxu0 %v253
    %267 = vmatpush.bf16.msra.mxu0 %v252
    %268 = vmatpush.bf16.msra.mxu0 %v251
    %269 = vmatpush.bf16.msra.mxu0 %v250
    %270 = vmatpush.bf16.msra.mxu0 %v249
    %271 = vmatpush.bf16.msra.mxu0 %v248
    %272 = vmatmul.bf16.gmra.mxu0 %v195
    %v273 = vpop.f32.mrf.mxu0
    %v274 = vadd.f32 %v214, %v273
    %v275 = vpop.f32.mrf.mxu0
    %v276 = vadd.f32 %v214, %v275
    %277 = vdwg.mxu0
    %vm278 = vcmask 64512
    %v279 = vsel %vm278, %v274, -inf
    %280 = vmax.xlane.f32.xlu0 %v279
    %v281 = vpop.xlane.xlu0 %280
    %v282 = vsel %vm278, %v276, -inf
    %283 = vmax.xlane.f32.xlu0 %v282
    %v284 = vpop.xlane.xlu0 %283
    %v285 = vsub.f32 %v274, %v281
    %v286 = vsub.f32 %v276, %v284
    %v287 = vmul.f32 %v285, 1.442695
    %v288 = vpow.pop %v287
    %v289 = vmul.f32 %v286, 1.442695
    %v290 = vpow.pop %v289
    %v291 = vsel %vm278, %v288, 0.0
    %292 = vadd.xlane.f32.xlu0 %v291
    %v293 = vpop.xlane.xlu0 %292
    %v294 = vsel %vm278, %v290, 0.0
    %295 = vadd.xlane.f32.xlu0 %v294
    %v296 = vpop.xlane.xlu0 %295
    %v297 = vlog2.pop %v293
    %v298 = vmul.f32 %v297, 0.6931472
    %v299 = vlog2.pop %v296
    %v300 = vmul.f32 %v299, 0.6931472
    %v301 = vsub.f32 %v285, %v298
    %v302 = vsub.f32 %v286, %v300
    %303 = vst.msk [vmem:[%s7] sm:$0xff] %vm278, %v301
    %304 = vst.msk [vmem:[%s7 + $0x8] sm:$0xff] %vm278, %v302
    // Predicated region
    $region38: #{tpu_custom_call.1} parent=1 // pred_check
      _
    $region39: #{tpu_custom_call.1} parent=1 // pred_check_branch
      %306 = sbr.rel (0) target = $region41
    $region40: #{tpu_custom_call.1} parent=1 // pred_region
      _
    $region41: #{tpu_custom_call.1} parent=1 // pred_fallthru
      _
    // Predicated region
    $region42: #{tpu_custom_call.1} parent=1 // pred_check
      _
    $region43: #{tpu_custom_call.1} parent=1 // pred_check_branch
      %308 = sbr.rel (0) target = $region45
    $region44: #{tpu_custom_call.1} parent=1 // pred_region
      _
    $region45: #{tpu_custom_call.1} parent=1 // pred_fallthru
      _
    %309 = vsyncpa [#allocation3], 1
    %310 = vsyncpa [#allocation5], 1

</llo_original>
